<compile_context>
chip_gen: v6e
topology: v6e:2x2x1
jax: 0.10.0
libtpu: 0.0.40
codegen_flags: <defaults>
</compile_context>

<pallas_src>
import jax
import jax.numpy as jnp
from jax.experimental import pallas as pl
from jax.experimental.pallas import tpu as pltpu


def _round_up(x, m):
    return ((x + m - 1) // m) * m


def _tensorcores_per_chip():
    # v7x has 2 TensorCores per chip; v5e/v6e have 1.  Fallback: 1.
    try:
        kind = jax.devices()[0].device_kind.lower()
        if "v7" in kind or "7x" in kind:
            return 2
    except Exception:
        pass
    return 1


def _attn_gated_kernel(x_ref, wab_ref, bab_ref, wct_ref, bct_ref, out_ref):
    # Fused gating matmul: (tile_n, L) @ (L, 2D), operands in input dtype
    # (bf16-friendly), accumulation in f32.
    h = jnp.dot(x_ref[...], wab_ref[...], preferred_element_type=jnp.float32)
    h = h + bab_ref[...].astype(jnp.float32)

    D = h.shape[1] // 2
    a = jnp.tanh(h[:, :D])            # attention_a: Linear -> Tanh     (EUP)
    b = jax.nn.sigmoid(h[:, D:])      # attention_b: Linear -> Sigmoid  (EUP)
    att = a * b                       # sigmoid gate                    (VPU)

    # attention_c, computed transposed so the result is lane-dense:
    #   out[c, n] = sum_d WcT[c, d] * att[n, d]  ==  (att @ Wc).T[c, n]
    # WcT was zero-padded to C_pad (multiple of 8) rows in the wrapper; only
    # the first C rows are real and stored.  MXU is idle (mem-bound kernel),
    # and this avoids a (tile_n, 1) -> (1, tile_n) relayout.
    wct = wct_ref[...].astype(jnp.float32)        # (C_pad, D)
    bct = bct_ref[...].astype(jnp.float32)        # (C, 1)
    C = bct_ref.shape[0]
    out = jax.lax.dot_general(
        att, wct,
        dimension_numbers=(((1,), (1,)), ((), ())),
        preferred_element_type=jnp.float32).T if False else jax.lax.dot_general(
        wct, att,
        dimension_numbers=(((1,), (1,)), ((), ())),
        preferred_element_type=jnp.float32)       # (C_pad, tile_n)
    out_ref[...] = (out[:C] + bct).astype(out_ref.dtype)


def attn_net_gated(x, wa, ba, wb, bb, wc, bc, *, batch_size=1, tile_n=4096):
    """Pallas equivalent of AttnNetGated.forward (dropout=False path)."""
    N, L = x.shape
    D = wa.shape[1]
    C = wc.shape[1]
    C_pad = _round_up(C, 8)

    # One-time weight prep in plain JAX (tiny tensors).
    wab = jnp.concatenate([wa, wb], axis=1)                   # (L, 2D)
    bab = jnp.concatenate([ba, bb], axis=1)                   # (1, 2D)
    wct = jnp.zeros((C_pad, D), wc.dtype).at[:C].set(wc.T)    # (C_pad, D)
    bct = bc.T                                                # (C, 1)

    # Row tile: multiple of 128 (lane-dense output + f32/bf16 sublane packing),
    # as large as practical.  Single big tile on 1-TC chips; split into >= 2
    # "parallel" steps only when the chip has 2 TensorCores (v7x megacore).
    LANE = 128
    n_tc = _tensorcores_per_chip()
    if n_tc >= 2 and N > LANE:
        cap = _round_up(pl.cdiv(N, n_tc), LANE)
    else:
        cap = _round_up(N, LANE)
    tile_n = max(LANE, min(int(tile_n), cap))
    grid = (pl.cdiv(N, tile_n),)   # ragged final block handled by Pallas

    out = pl.pallas_call(
        _attn_gated_kernel,
        out_shape=jax.ShapeDtypeStruct((C, N), x.dtype),
        grid_spec=pltpu.PrefetchScalarGridSpec(
            num_scalar_prefetch=0,
            grid=grid,
            in_specs=[
                pl.BlockSpec((tile_n, L), lambda i: (i, 0)),      # x tile
                pl.BlockSpec((L, 2 * D), lambda i: (0, 0)),       # fused Wa|Wb
                pl.BlockSpec((1, 2 * D), lambda i: (0, 0)),       # fused ba|bb
                pl.BlockSpec((C_pad, D), lambda i: (0, 0)),       # Wc^T (padded)
                pl.BlockSpec((C, 1), lambda i: (0, 0)),           # bc^T
            ],
            out_specs=pl.BlockSpec((C, tile_n), lambda i: (0, i)),
        ),
        compiler_params=pltpu.CompilerParams(
            dimension_semantics=("parallel",),
            # 2x double-buffered (tile_n, L) x tiles + tiny weights; far under
            # v7x's 64 MiB physical VMEM.
            vmem_limit_bytes=32 * 1024 * 1024,
        ),
    )(x, wab, bab, wct, bct)

    # (C, N) -> (N, C) -> (batch, N//batch, C).  For C == 1 the transpose is a
    # free reshape; for C > 1 it's a tiny XLA transpose over C*N elements.
    return out.T.reshape(batch_size, -1, C)


def _reference(x, wa, ba, wb, bb, wc, bc, batch_size):
    x = x.astype(jnp.float32)
    a = jnp.tanh(x @ wa.astype(jnp.float32) + ba.astype(jnp.float32))
    b = jax.nn.sigmoid(x @ wb.astype(jnp.float32) + bb.astype(jnp.float32))
    att = (a * b) @ wc.astype(jnp.float32) + bc.astype(jnp.float32)
    return att.reshape(batch_size, -1, wc.shape[1])


if __name__ == "__main__":
    # Module hyper-params (match AttnNetGated defaults): L=128, D=64, n_classes=1.
    L, D, C = 128, 64, 1
    batch_size, seq = 2, 8
    N = batch_size * seq  # total instances fed as a flat (N, L) matrix

    key = jax.random.PRNGKey(0)
    (k_x, k_wa, k_ba, k_wb, k_bb, k_wc, k_bc,
     k_x2, k_wc3, k_bc3) = jax.random.split(key, 10)

    x = jax.random.normal(k_x, (N, L), dtype=jnp.float32)
    wa = jax.random.uniform(k_wa, (L, D), minval=-1.0, maxval=1.0) / jnp.sqrt(L)
    ba = jax.random.uniform(k_ba, (1, D), minval=-1.0, maxval=1.0) / jnp.sqrt(L)
    wb = jax.random.uniform(k_wb, (L, D), minval=-1.0, maxval=1.0) / jnp.sqrt(L)
    bb = jax.random.uniform(k_bb, (1, D), minval=-1.0, maxval=1.0) / jnp.sqrt(L)
    wc = jax.random.uniform(k_wc, (D, C), minval=-1.0, maxval=1.0) / jnp.sqrt(D)
    bc = jax.random.uniform(k_bc, (1, C), minval=-1.0, maxval=1.0) / jnp.sqrt(D)

    # TODO(synk): dropout=True branch (nn.Dropout(0.25)) not implemented; module default is dropout=False.

    # --- f32 path, small demo shape, n_classes = 1 -----------------------------
    out = attn_net_gated(x, wa, ba, wb, bb, wc, bc, batch_size=batch_size)
    out = jax.block_until_ready(out)
    ref = _reference(x, wa, ba, wb, bb, wc, bc, batch_size)
    assert out.shape == (batch_size, seq, C), out.shape
    assert jnp.allclose(out, ref, atol=1e-4, rtol=1e-4), \
        float(jnp.max(jnp.abs(out - ref)))

    # --- non-divisible N (ragged final block, no wrapper pad) + bf16 operands --
    N2, seq2 = 300, 150  # batch_size=2, 300 rows: not a multiple of the row tile
    x2 = jax.random.normal(k_x2, (N2, L), dtype=jnp.float32)
    out2 = attn_net_gated(
        x2.astype(jnp.bfloat16),
        wa.astype(jnp.bfloat16), ba.astype(jnp.bfloat16),
        wb.astype(jnp.bfloat16), bb.astype(jnp.bfloat16),
        wc.astype(jnp.bfloat16), bc.astype(jnp.bfloat16),
        batch_size=batch_size,
    )
    out2 = jax.block_until_ready(out2)
    ref2 = _reference(x2, wa, ba, wb, bb, wc, bc, batch_size)
    assert out2.shape == (batch_size, seq2, C), out2.shape
    assert jnp.allclose(out2.astype(jnp.float32), ref2, atol=5e-2, rtol=5e-2), \
        float(jnp.max(jnp.abs(out2.astype(jnp.float32) - ref2)))

    # --- n_classes > 1 path (exercises general-C lane-dense output) ------------
    C3 = 4
    wc3 = jax.random.uniform(k_wc3, (D, C3), minval=-1.0, maxval=1.0) / jnp.sqrt(D)
    bc3 = jax.random.uniform(k_bc3, (1, C3), minval=-1.0, maxval=1.0) / jnp.sqrt(D)
    out3 = attn_net_gated(x, wa, ba, wb, bb, wc3, bc3, batch_size=batch_size)
    out3 = jax.block_until_ready(out3)
    ref3 = _reference(x, wa, ba, wb, bb, wc3, bc3, batch_size)
    assert out3.shape == (batch_size, seq, C3), out3.shape
    assert jnp.allclose(out3, ref3, atol=1e-4, rtol=1e-4), \
        float(jnp.max(jnp.abs(out3 - ref3)))

    print("KERNEL_OK")
</pallas_src>

<mosaic_0001>
module attributes {stable_mosaic.version = 11 : i64} {
  func.func @_attn_gated_kernel(%arg0: i32, %arg1: memref<128x128xf32, #tpu.memory_space<vmem>>, %arg2: memref<128x128xf32, #tpu.memory_space<vmem>>, %arg3: memref<1x128xf32, #tpu.memory_space<vmem>>, %arg4: memref<8x64xf32, #tpu.memory_space<vmem>>, %arg5: memref<1x1xf32, #tpu.memory_space<vmem>>, %arg6: memref<1x128xf32, #tpu.memory_space<vmem>>) attributes {dimension_semantics = [#tpu.dimension_semantics<parallel>], iteration_bounds = array<i64: 1>, scalar_prefetch = 0 : i64, scratch_operands = 0 : i64, tpu.core_type = #tpu.core_type<tc>, window_params = [{transform_indices = @transform_0, window_bounds = array<i64: 128, 128>}, {pipeline_mode = #tpu.pipeline_mode<synchronous>, transform_indices = @transform_1, window_bounds = array<i64: 128, 128>}, {pipeline_mode = #tpu.pipeline_mode<synchronous>, transform_indices = @transform_2, window_bounds = array<i64: 1, 128>}, {pipeline_mode = #tpu.pipeline_mode<synchronous>, transform_indices = @transform_3, window_bounds = array<i64: 8, 64>}, {pipeline_mode = #tpu.pipeline_mode<synchronous>, transform_indices = @transform_4, window_bounds = array<i64: 1, 1>}, {transform_indices = @transform_5, window_bounds = array<i64: 1, 128>}]} {
    %c0 = arith.constant 0 : index
    %c0_0 = arith.constant 0 : index
    %0 = vector.load %arg1[%c0, %c0_0] : memref<128x128xf32, #tpu.memory_space<vmem>>, vector<128x128xf32>
    %c0_1 = arith.constant 0 : index
    %c0_2 = arith.constant 0 : index
    %1 = vector.load %arg2[%c0_1, %c0_2] : memref<128x128xf32, #tpu.memory_space<vmem>>, vector<128x128xf32>
    %cst = arith.constant dense<0.000000e+00> : vector<128x128xf32>
    %2 = tpu.matmul %0, %1, %cst {dimension_numbers = #tpu.dot_dimension_numbers<[1], [0], [0], [1], [0, 0, 1, 1], [], []>} : vector<128x128xf32>, vector<128x128xf32>, vector<128x128xf32> -> vector<128x128xf32>
    %c0_3 = arith.constant 0 : index
    %c0_4 = arith.constant 0 : index
    %3 = vector.load %arg3[%c0_3, %c0_4] : memref<1x128xf32, #tpu.memory_space<vmem>>, vector<1x128xf32>
    %4 = vector.broadcast %3 : vector<1x128xf32> to vector<128x128xf32>
    %5 = arith.addf %2, %4 : vector<128x128xf32>
    %6 = vector.extract_strided_slice %5 {offsets = [0, 0], sizes = [128, 64], strides = [1, 1]} : vector<128x128xf32> to vector<128x64xf32>
    %7 = math.tanh %6 : vector<128x64xf32>
    %8 = vector.extract_strided_slice %5 {offsets = [0, 64], sizes = [128, 64], strides = [1, 1]} : vector<128x128xf32> to vector<128x64xf32>
    %9 = arith.negf %8 : vector<128x64xf32>
    %10 = math.exp %9 : vector<128x64xf32>
    %cst_5 = arith.constant 1.000000e+00 : f32
    %11 = vector.broadcast %cst_5 : f32 to vector<128x64xf32>
    %12 = arith.addf %11, %10 : vector<128x64xf32>
    %13 = arith.divf %11, %12 : vector<128x64xf32>
    %14 = arith.mulf %7, %13 : vector<128x64xf32>
    %c0_6 = arith.constant 0 : index
    %c0_7 = arith.constant 0 : index
    %15 = vector.load %arg4[%c0_6, %c0_7] : memref<8x64xf32, #tpu.memory_space<vmem>>, vector<8x64xf32>
    %c0_8 = arith.constant 0 : index
    %c0_9 = arith.constant 0 : index
    %16 = vector.load %arg5[%c0_8, %c0_9] : memref<1x1xf32, #tpu.memory_space<vmem>>, vector<1x1xf32>
    %cst_10 = arith.constant dense<0.000000e+00> : vector<8x128xf32>
    %17 = tpu.matmul %15, %14, %cst_10 {dimension_numbers = #tpu.dot_dimension_numbers<[1], [1], [0], [0], [0, 0, 1, 0], [], []>} : vector<8x64xf32>, vector<128x64xf32>, vector<8x128xf32> -> vector<8x128xf32>
    %18 = vector.extract_strided_slice %17 {offsets = [0, 0], sizes = [1, 128], strides = [1, 1]} : vector<8x128xf32> to vector<1x128xf32>
    %19 = vector.broadcast %16 : vector<1x1xf32> to vector<1x128xf32>
    %20 = arith.addf %18, %19 : vector<1x128xf32>
    %c0_11 = arith.constant 0 : index
    %c0_12 = arith.constant 0 : index
    %21 = vector.load %arg6[%c0_11, %c0_12] : memref<1x128xf32, #tpu.memory_space<vmem>>, vector<1x128xf32>
    tpu.vector_store %arg6[%c0_11, %c0_12], %20 {strides = array<i32>} : memref<1x128xf32, #tpu.memory_space<vmem>>, vector<1x128xf32>,
    return
  }
  func.func @transform_0(%arg0: i32) -> (i32, i32) {
    %c0_i32 = arith.constant 0 : i32
    %c0_i32_0 = arith.constant 0 : i32
    return %arg0, %c0_i32 : i32, i32
  }
  func.func @transform_1(%arg0: i32) -> (i32, i32) {
    %c0_i32 = arith.constant 0 : i32
    %c0_i32_0 = arith.constant 0 : i32
    %c0_i32_1 = arith.constant 0 : i32
    return %c0_i32, %c0_i32_0 : i32, i32
  }
  func.func @transform_2(%arg0: i32) -> (i32, i32) {
    %c0_i32 = arith.constant 0 : i32
    %c0_i32_0 = arith.constant 0 : i32
    %c0_i32_1 = arith.constant 0 : i32
    return %c0_i32, %c0_i32_0 : i32, i32
  }
  func.func @transform_3(%arg0: i32) -> (i32, i32) {
    %c0_i32 = arith.constant 0 : i32
    %c0_i32_0 = arith.constant 0 : i32
    %c0_i32_1 = arith.constant 0 : i32
    return %c0_i32, %c0_i32_0 : i32, i32
  }
  func.func @transform_4(%arg0: i32) -> (i32, i32) {
    %c0_i32 = arith.constant 0 : i32
    %c0_i32_0 = arith.constant 0 : i32
    %c0_i32_1 = arith.constant 0 : i32
    return %c0_i32, %c0_i32_0 : i32, i32
  }
  func.func @transform_5(%arg0: i32) -> (i32, i32) {
    %c0_i32 = arith.constant 0 : i32
    %c0_i32_0 = arith.constant 0 : i32
    return %c0_i32, %arg0 : i32, i32
  }
}

</mosaic_0001>

<llo_original>
// kernel: tpu_custom_call.1
$region0: #{tpu_custom_call.1}
  #allocation0 [shape = 'u32[]', space=smem, size = 0x4, offset = 0x4, fixed_abs, tag = 'smem constant byte address 0x4 - core index']
  #allocation1 [shape = 'u32[144,128]{1,0:T(1,128)}', space=vmem, size = 0x12000, scoped, tag = 'internal scratch']
  #allocation2 [shape = 'f32[1,1]{1,0:T(1,128)S(1)}', space=vmem, size = 0x200, scoped, tag = 'scoped memory for tpu_custom_call.1']
  %s0 = inlined_call_operand.hbm [shape: f32[16,128], index: 0, kind: input, shape index: {}]
  %s1 = inlined_call_operand.hbm [shape: f32[128,128], index: 1, kind: input, shape index: {}]
  %s2 = inlined_call_operand.vmem [shape: f32[1,128], index: 2, kind: input, shape index: {}]
  %s3 = inlined_call_operand.hbm [shape: f32[8,64], index: 3, kind: input, shape index: {}]
  %s4 = inlined_call_operand.<no memory space> [shape: f32[1,1], index: 4, kind: input, shape index: {}]
  %s5 = inlined_call_operand.hbm [shape: f32[1,16], index: 5, kind: output, shape index: {}]
  %s6 = sld [smem:[#allocation0]]
  $region42: #{tpu_custom_call.1} parent=0
    _
  %s8 = ssub.s32 1, %s6
  %s9 = scalar_select 0, %s8, %s6
  %v10 = vstv %s4
  %11 = vst [vmem:[#allocation2] sm:$0x1] %v10
  $region1: #{tpu_custom_call.1} parent=0
    #allocation3 [shape = 'u8[65536]{0}', space=vmem, size = 0x10000, scoped, tag = 'input window, operand 0, single buffered']
    #allocation4 [shape = 's32[1]{0}', space=sflag, size = 0x4, scoped, tag = 'scoped memory for tpu_custom_call.1']
    #allocation5 [shape = 's32[1]{0}', space=sflag, size = 0x4, scoped, tag = 'scoped memory for tpu_custom_call.1']
    #allocation6 [shape = 'u8[65536]{0}', space=vmem, size = 0x10000, scoped, tag = 'input window, operand 1, single buffered']
    #allocation7 [shape = 's32[1]{0}', space=sflag, size = 0x4, scoped, tag = 'scoped memory for tpu_custom_call.1']
    #allocation8 [shape = 'u8[4096]{0}', space=vmem, size = 0x1000, scoped, tag = 'input window, operand 3, single buffered']
    #allocation9 [shape = 'u8[512]{0}', space=vmem, size = 0x400, scoped, tag = 'output window, operand 0, single buffered']
    %12 = vsyncpa [#allocation4], 0
    %13 = vsyncpa [#allocation7], 0
    %14 = vsyncpa [#allocation5], 0
    // Predicated region
    $region2: #{tpu_custom_call.1} parent=1 // pred_check
      _
    $region3: #{tpu_custom_call.1} parent=1 // pred_check_branch
      %16 = sbr.rel (0) target = $region5
    $region4: #{tpu_custom_call.1} parent=1 // pred_region
      %s18 = ssub.s32 2048, 256
      %19 = vsyncadd [#allocation4], %s18
      %s20 = sshll.u32 [#allocation3], 4
      %s21 = int_to_ptr.vmem [resolvable:$true] %s20
      %26 = dma.hbm_to_vmem [thread:$0]  %s0, 256, %s21, [#allocation4], 128, 128, 8
    $region5: #{tpu_custom_call.1} parent=1 // pred_fallthru
      _
    // Predicated region
    $region6: #{tpu_custom_call.1} parent=1 // pred_check
      _
    $region7: #{tpu_custom_call.1} parent=1 // pred_check_branch
      %28 = sbr.rel (0) target = $region9
    $region8: #{tpu_custom_call.1} parent=1 // pred_region
      %s30 = ssub.s32 2048, 2048
      %31 = vsyncadd [#allocation7], %s30
      %s32 = sshll.u32 [#allocation6], 4
      %s33 = int_to_ptr.vmem [resolvable:$true] %s32
      %38 = dma.hbm_to_vmem [thread:$0]  %s1, 2048, %s33, [#allocation7], 128, 128, 8
    $region9: #{tpu_custom_call.1} parent=1 // pred_fallthru
      _
    // Predicated region
    $region10: #{tpu_custom_call.1} parent=1 // pred_check
      _
    $region11: #{tpu_custom_call.1} parent=1 // pred_check_branch
      %40 = sbr.rel (0) target = $region13
    $region12: #{tpu_custom_call.1} parent=1 // pred_region
      _
    $region13: #{tpu_custom_call.1} parent=1 // pred_fallthru
      _
    // Predicated region
    $region14: #{tpu_custom_call.1} parent=1 // pred_check
      _
    $region15: #{tpu_custom_call.1} parent=1 // pred_check_branch
      %42 = sbr.rel (0) target = $region17
    $region16: #{tpu_custom_call.1} parent=1 // pred_region
      %s44 = ssub.s32 128, 128
      %45 = vsyncadd [#allocation7], %s44
      %s47 = sshll.u32 [#allocation8], 4
      %s48 = int_to_ptr.vmem [resolvable:$true] %s47
      %50 = dma.hbm_to_vmem [thread:$0]  %s3, 128, %s48, [#allocation7]
    $region17: #{tpu_custom_call.1} parent=1 // pred_fallthru
      _
    // Predicated region
    $region18: #{tpu_custom_call.1} parent=1 // pred_check
      _
    $region19: #{tpu_custom_call.1} parent=1 // pred_check_branch
      %52 = sbr.rel (0) target = $region21
    $region20: #{tpu_custom_call.1} parent=1 // pred_region
      _
    $region21: #{tpu_custom_call.1} parent=1 // pred_fallthru
      _
    // Predicated region
    $region22: #{tpu_custom_call.1} parent=1 // pred_check
      _
    $region23: #{tpu_custom_call.1} parent=1 // pred_check_branch
      %54 = sbr.rel (0) target = $region25
    $region24: #{tpu_custom_call.1} parent=1 // pred_region
      %55 = dma.done [#allocation4], 2048
    $region25: #{tpu_custom_call.1} parent=1 // pred_fallthru
      _
    // Predicated region
    $region26: #{tpu_custom_call.1} parent=1 // pred_check
      _
    $region27: #{tpu_custom_call.1} parent=1 // pred_check_branch
      %57 = sbr.rel (0) target = $region29
    $region28: #{tpu_custom_call.1} parent=1 // pred_region
      %58 = dma.done [#allocation7], 2048
    $region29: #{tpu_custom_call.1} parent=1 // pred_fallthru
      _
    // Predicated region
    $region30: #{tpu_custom_call.1} parent=1 // pred_check
      _
    $region31: #{tpu_custom_call.1} parent=1 // pred_check_branch
      %60 = sbr.rel (0) target = $region33
    $region32: #{tpu_custom_call.1} parent=1 // pred_region
      %61 = dma.done [#allocation7], 128
    $region33: #{tpu_custom_call.1} parent=1 // pred_fallthru
      _
    %v62 = vld [vmem:[#allocation3] sm:$0xff]
    %v63 = vld [vmem:[#allocation3 + $0x8] sm:$0xff]
    %v64 = vld [vmem:[#allocation3 + $0x10] sm:$0xff]
    %v65 = vld [vmem:[#allocation3 + $0x18] sm:$0xff]
    %v66 = vld [vmem:[#allocation3 + $0x20] sm:$0xff]
    %v67 = vld [vmem:[#allocation3 + $0x28] sm:$0xff]
    %v68 = vld [vmem:[#allocation3 + $0x30] sm:$0xff]
    %v69 = vld [vmem:[#allocation3 + $0x38] sm:$0xff]
    %v70 = vld [vmem:[#allocation3 + $0x40] sm:$0xff]
    %v71 = vld [vmem:[#allocation3 + $0x48] sm:$0xff]
    %v72 = vld [vmem:[#allocation3 + $0x50] sm:$0xff]
    %v73 = vld [vmem:[#allocation3 + $0x58] sm:$0xff]
    %v74 = vld [vmem:[#allocation3 + $0x60] sm:$0xff]
    %v75 = vld [vmem:[#allocation3 + $0x68] sm:$0xff]
    %v76 = vld [vmem:[#allocation3 + $0x70] sm:$0xff]
    %v77 = vld [vmem:[#allocation3 + $0x78] sm:$0xff]
    %v78 = vld [vmem:[#allocation6] sm:$0xff]
    %v79 = vld [vmem:[#allocation6 + $0x8] sm:$0xff]
    %v80 = vld [vmem:[#allocation6 + $0x10] sm:$0xff]
    %v81 = vld [vmem:[#allocation6 + $0x18] sm:$0xff]
    %v82 = vld [vmem:[#allocation6 + $0x20] sm:$0xff]
    %v83 = vld [vmem:[#allocation6 + $0x28] sm:$0xff]
    %v84 = vld [vmem:[#allocation6 + $0x30] sm:$0xff]
    %v85 = vld [vmem:[#allocation6 + $0x38] sm:$0xff]
    %v86 = vld [vmem:[#allocation6 + $0x40] sm:$0xff]
    %v87 = vld [vmem:[#allocation6 + $0x48] sm:$0xff]
    %v88 = vld [vmem:[#allocation6 + $0x50] sm:$0xff]
    %v89 = vld [vmem:[#allocation6 + $0x58] sm:$0xff]
    %v90 = vld [vmem:[#allocation6 + $0x60] sm:$0xff]
    %v91 = vld [vmem:[#allocation6 + $0x68] sm:$0xff]
    %v92 = vld [vmem:[#allocation6 + $0x70] sm:$0xff]
    %v93 = vld [vmem:[#allocation6 + $0x78] sm:$0xff]
    %v94 = vld [vmem:[%s2] sm:$0x1]
    %v96 = vlaneseq
    %v97 = vshrl.u32 %v96, 7
    %v98 = vsub.s32 0, %v97
    %v99 = vrot.slane %v94, %v98
    %101 = vmatprep.subr.mxu0 0.0
    %102 = vmatpush1.msra.mxu0 %v93
    %103 = vmatprep.subr.mxu0 0.0
    %104 = vmatpush1.msra.mxu0 %v92
    %105 = vmatprep.subr.mxu0 0.0
    %106 = vmatpush1.msra.mxu0 %v91
    %107 = vmatprep.subr.mxu0 0.0
    %108 = vmatpush1.msra.mxu0 %v90
    %109 = vmatprep.subr.mxu0 0.0
    %110 = vmatpush1.msra.mxu0 %v89
    %111 = vmatprep.subr.mxu0 0.0
    %112 = vmatpush1.msra.mxu0 %v88
    %113 = vmatprep.subr.mxu0 0.0
    %114 = vmatpush1.msra.mxu0 %v87
    %115 = vmatprep.subr.mxu0 0.0
    %116 = vmatpush1.msra.mxu0 %v86
    %117 = vmatprep.subr.mxu0 0.0
    %118 = vmatpush1.msra.mxu0 %v85
    %119 = vmatprep.subr.mxu0 0.0
    %120 = vmatpush1.msra.mxu0 %v84
    %121 = vmatprep.subr.mxu0 0.0
    %122 = vmatpush1.msra.mxu0 %v83
    %123 = vmatprep.subr.mxu0 0.0
    %124 = vmatpush1.msra.mxu0 %v82
    %125 = vmatprep.subr.mxu0 0.0
    %126 = vmatpush1.msra.mxu0 %v81
    %127 = vmatprep.subr.mxu0 0.0
    %128 = vmatpush1.msra.mxu0 %v80
    %129 = vmatprep.subr.mxu0 0.0
    %130 = vmatpush1.msra.mxu0 %v79
    %131 = vmatprep.subr.mxu0 0.0
    %132 = vmatpush1.msra.mxu0 %v78
    %133 = vmatprep.subr.mxu0 0.0
    %134 = vmatpush2.msra.mxu0 0.0
    %135 = vmatprep.subr.mxu0 0.0
    %136 = vmatpush2.msra.mxu0 0.0
    %137 = vmatprep.subr.mxu0 0.0
    %138 = vmatpush2.msra.mxu0 0.0
    %139 = vmatprep.subr.mxu0 0.0
    %140 = vmatpush2.msra.mxu0 0.0
    %141 = vmatprep.subr.mxu0 0.0
    %142 = vmatpush2.msra.mxu0 0.0
    %143 = vmatprep.subr.mxu0 0.0
    %144 = vmatpush2.msra.mxu0 0.0
    %145 = vmatprep.subr.mxu0 0.0
    %146 = vmatpush2.msra.mxu0 0.0
    %147 = vmatprep.subr.mxu0 0.0
    %148 = vmatpush2.msra.mxu0 0.0
    %149 = vmatprep.subr.mxu0 0.0
    %150 = vmatpush2.msra.mxu0 0.0
    %151 = vmatprep.subr.mxu0 0.0
    %152 = vmatpush2.msra.mxu0 0.0
    %153 = vmatprep.subr.mxu0 0.0
    %154 = vmatpush2.msra.mxu0 0.0
    %155 = vmatprep.subr.mxu0 0.0
    %156 = vmatpush2.msra.mxu0 0.0
    %157 = vmatprep.subr.mxu0 0.0
    %158 = vmatpush2.msra.mxu0 0.0
    %159 = vmatprep.subr.mxu0 0.0
    %160 = vmatpush2.msra.mxu0 0.0
    %161 = vmatprep.subr.mxu0 0.0
    %162 = vmatpush2.msra.mxu0 0.0
    %163 = vmatprep.subr.mxu0 0.0
    %164 = vmatpush2.msra.mxu0 0.0
    %165 = vmatprep.mubr.f32.mxu0 0.0
    %166 = vmatmul.mubr.f32.gmra.mxu0 %v62
    %v167 = vpop.f32.mrf.mxu0
    %v168 = vadd.f32 %v99, %v167
    %v169 = vpop.f32.mrf.mxu0
    %170 = vmatprep.mubr.f32.mxu0 0.0
    %171 = vmatmul.mubr.f32.gmra.mxu0 %v63
    %v172 = vpop.f32.mrf.mxu0
    %v173 = vadd.f32 %v99, %v172
    %v174 = vpop.f32.mrf.mxu0
    %175 = vmatprep.mubr.f32.mxu0 0.0
    %176 = vmatmul.mubr.f32.gmra.mxu0 %v64
    %v177 = vpop.f32.mrf.mxu0
    %v178 = vadd.f32 %v99, %v177
    %v179 = vpop.f32.mrf.mxu0
    %180 = vmatprep.mubr.f32.mxu0 0.0
    %181 = vmatmul.mubr.f32.gmra.mxu0 %v65
    %v182 = vpop.f32.mrf.mxu0
    %v183 = vadd.f32 %v99, %v182
    %v184 = vpop.f32.mrf.mxu0
    %185 = vmatprep.mubr.f32.mxu0 0.0
    %186 = vmatmul.mubr.f32.gmra.mxu0 %v66
    %v187 = vpop.f32.mrf.mxu0
    %v188 = vadd.f32 %v99, %v187
    %v189 = vpop.f32.mrf.mxu0
    %190 = vmatprep.mubr.f32.mxu0 0.0
    %191 = vmatmul.mubr.f32.gmra.mxu0 %v67
    %v192 = vpop.f32.mrf.mxu0
    %v193 = vadd.f32 %v99, %v192
    %v194 = vpop.f32.mrf.mxu0
    %195 = vmatprep.mubr.f32.mxu0 0.0
    %196 = vmatmul.mubr.f32.gmra.mxu0 %v68
    %v197 = vpop.f32.mrf.mxu0
    %v198 = vadd.f32 %v99, %v197
    %v199 = vpop.f32.mrf.mxu0
    %200 = vmatprep.mubr.f32.mxu0 0.0
    %201 = vmatmul.mubr.f32.gmra.mxu0 %v69
    %v202 = vpop.f32.mrf.mxu0
    %v203 = vadd.f32 %v99, %v202
    %v204 = vpop.f32.mrf.mxu0
    %205 = vmatprep.mubr.f32.mxu0 0.0
    %206 = vmatmul.mubr.f32.gmra.mxu0 %v70
    %v207 = vpop.f32.mrf.mxu0
    %v208 = vadd.f32 %v99, %v207
    %v209 = vpop.f32.mrf.mxu0
    %210 = vmatprep.mubr.f32.mxu0 0.0
    %211 = vmatmul.mubr.f32.gmra.mxu0 %v71
    %v212 = vpop.f32.mrf.mxu0
    %v213 = vadd.f32 %v99, %v212
    %v214 = vpop.f32.mrf.mxu0
    %215 = vmatprep.mubr.f32.mxu0 0.0
    %216 = vmatmul.mubr.f32.gmra.mxu0 %v72
    %v217 = vpop.f32.mrf.mxu0
    %v218 = vadd.f32 %v99, %v217
    %v219 = vpop.f32.mrf.mxu0
    %220 = vmatprep.mubr.f32.mxu0 0.0
    %221 = vmatmul.mubr.f32.gmra.mxu0 %v73
    %v222 = vpop.f32.mrf.mxu0
    %v223 = vadd.f32 %v99, %v222
    %v224 = vpop.f32.mrf.mxu0
    %225 = vmatprep.mubr.f32.mxu0 0.0
    %226 = vmatmul.mubr.f32.gmra.mxu0 %v74
    %v227 = vpop.f32.mrf.mxu0
    %v228 = vadd.f32 %v99, %v227
    %v229 = vpop.f32.mrf.mxu0
    %230 = vmatprep.mubr.f32.mxu0 0.0
    %231 = vmatmul.mubr.f32.gmra.mxu0 %v75
    %v232 = vpop.f32.mrf.mxu0
    %v233 = vadd.f32 %v99, %v232
    %v234 = vpop.f32.mrf.mxu0
    %235 = vmatprep.mubr.f32.mxu0 0.0
    %236 = vmatmul.mubr.f32.gmra.mxu0 %v76
    %v237 = vpop.f32.mrf.mxu0
    %v238 = vadd.f32 %v99, %v237
    %v239 = vpop.f32.mrf.mxu0
    %240 = vmatprep.mubr.f32.mxu0 0.0
    %241 = vmatmul.mubr.f32.gmra.mxu0 %v77
    %v242 = vpop.f32.mrf.mxu0
    %v243 = vadd.f32 %v99, %v242
    %v244 = vpop.f32.mrf.mxu0
    %245 = vdwg.mxu0
    %v246 = vtanh.pop %v168
    %v247 = vtanh.pop %v173
    %v248 = vtanh.pop %v178
    %v249 = vtanh.pop %v183
    %v250 = vtanh.pop %v188
    %v251 = vtanh.pop %v193
    %v252 = vtanh.pop %v198
    %v253 = vtanh.pop %v203
    %v254 = vtanh.pop %v208
    %v255 = vtanh.pop %v213
    %v256 = vtanh.pop %v218
    %v257 = vtanh.pop %v223
    %v258 = vtanh.pop %v228
    %v259 = vtanh.pop %v233
    %v260 = vtanh.pop %v238
    %v261 = vtanh.pop %v243
    %v262 = vxor.u32 %v168, 2147483648
    %v263 = vxor.u32 %v173, 2147483648
    %v264 = vxor.u32 %v178, 2147483648
    %v265 = vxor.u32 %v183, 2147483648
    %v266 = vxor.u32 %v188, 2147483648
    %v267 = vxor.u32 %v193, 2147483648
    %v268 = vxor.u32 %v198, 2147483648
    %v269 = vxor.u32 %v203, 2147483648
    %v270 = vxor.u32 %v208, 2147483648
    %v271 = vxor.u32 %v213, 2147483648
    %v272 = vxor.u32 %v218, 2147483648
    %v273 = vxor.u32 %v223, 2147483648
    %v274 = vxor.u32 %v228, 2147483648
    %v275 = vxor.u32 %v233, 2147483648
    %v276 = vxor.u32 %v238, 2147483648
    %v277 = vxor.u32 %v243, 2147483648
    %v278 = vmul.f32 %v262, 1.442695
    %v279 = vpow.pop %v278
    %v280 = vmul.f32 %v263, 1.442695
    %v281 = vpow.pop %v280
    %v282 = vmul.f32 %v264, 1.442695
    %v283 = vpow.pop %v282
    %v284 = vmul.f32 %v265, 1.442695
    %v285 = vpow.pop %v284
    %v286 = vmul.f32 %v266, 1.442695
    %v287 = vpow.pop %v286
    %v288 = vmul.f32 %v267, 1.442695
    %v289 = vpow.pop %v288
    %v290 = vmul.f32 %v268, 1.442695
    %v291 = vpow.pop %v290
    %v292 = vmul.f32 %v269, 1.442695
    %v293 = vpow.pop %v292
    %v294 = vmul.f32 %v270, 1.442695
    %v295 = vpow.pop %v294
    %v296 = vmul.f32 %v271, 1.442695
    %v297 = vpow.pop %v296
    %v298 = vmul.f32 %v272, 1.442695
    %v299 = vpow.pop %v298
    %v300 = vmul.f32 %v273, 1.442695
    %v301 = vpow.pop %v300
    %v302 = vmul.f32 %v274, 1.442695
    %v303 = vpow.pop %v302
    %v304 = vmul.f32 %v275, 1.442695
    %v305 = vpow.pop %v304
    %v306 = vmul.f32 %v276, 1.442695
    %v307 = vpow.pop %v306
    %v308 = vmul.f32 %v277, 1.442695
    %v309 = vpow.pop %v308
    %v310 = vadd.f32 %v279, 1.0
    %v311 = vadd.f32 %v281, 1.0
    %v312 = vadd.f32 %v283, 1.0
    %v313 = vadd.f32 %v285, 1.0
    %v314 = vadd.f32 %v287, 1.0
    %v315 = vadd.f32 %v289, 1.0
    %v316 = vadd.f32 %v291, 1.0
    %v317 = vadd.f32 %v293, 1.0
    %v318 = vadd.f32 %v295, 1.0
    %v319 = vadd.f32 %v297, 1.0
    %v320 = vadd.f32 %v299, 1.0
    %v321 = vadd.f32 %v301, 1.0
    %v322 = vadd.f32 %v303, 1.0
    %v323 = vadd.f32 %v305, 1.0
    %v324 = vadd.f32 %v307, 1.0
    %v325 = vadd.f32 %v309, 1.0
    %v326 = vrcp.pop %v310
    %v327 = vmul.f32 1.0, %v326
    %v328 = vrcp.pop %v311
    %v329 = vmul.f32 1.0, %v328
    %v330 = vrcp.pop %v312
    %v331 = vmul.f32 1.0, %v330
    %v332 = vrcp.pop %v313
    %v333 = vmul.f32 1.0, %v332
    %v334 = vrcp.pop %v314
    %v335 = vmul.f32 1.0, %v334
    %v336 = vrcp.pop %v315
    %v337 = vmul.f32 1.0, %v336
    %v338 = vrcp.pop %v316
    %v339 = vmul.f32 1.0, %v338
    %v340 = vrcp.pop %v317
    %v341 = vmul.f32 1.0, %v340
    %v342 = vrcp.pop %v318
    %v343 = vmul.f32 1.0, %v342
    %v344 = vrcp.pop %v319
    %v345 = vmul.f32 1.0, %v344
    %v346 = vrcp.pop %v320
    %v347 = vmul.f32 1.0, %v346
    %v348 = vrcp.pop %v321
    %v349 = vmul.f32 1.0, %v348
    %v350 = vrcp.pop %v322
    %v351 = vmul.f32 1.0, %v350
    %v352 = vrcp.pop %v323
    %v353 = vmul.f32 1.0, %v352
    %v354 = vrcp.pop %v324
    %v355 = vmul.f32 1.0, %v354
    %v356 = vrcp.pop %v325
    %v357 = vmul.f32 1.0, %v356
    %374 = vrot.lane.b32.xlu0 %v327, 64
    %v375 = vpop.permute.xlu0 %374
    %376 = vrot.lane.b32.xlu0 %v329, 64
    %v377 = vpop.permute.xlu0 %376
    %378 = vrot.lane.b32.xlu0 %v331, 64
    %v379 = vpop.permute.xlu0 %378
    %380 = vrot.lane.b32.xlu0 %v333, 64
    %v381 = vpop.permute.xlu0 %380
    %382 = vrot.lane.b32.xlu0 %v335, 64
    %v383 = vpop.permute.xlu0 %382
    %384 = vrot.lane.b32.xlu0 %v337, 64
    %v385 = vpop.permute.xlu0 %384
    %386 = vrot.lane.b32.xlu0 %v339, 64
    %v387 = vpop.permute.xlu0 %386
    %388 = vrot.lane.b32.xlu0 %v341, 64
    %v389 = vpop.permute.xlu0 %388
    %390 = vrot.lane.b32.xlu0 %v343, 64
    %v391 = vpop.permute.xlu0 %390
    %392 = vrot.lane.b32.xlu0 %v345, 64
    %v393 = vpop.permute.xlu0 %392
    %394 = vrot.lane.b32.xlu0 %v347, 64
    %v395 = vpop.permute.xlu0 %394
    %396 = vrot.lane.b32.xlu0 %v349, 64
    %v397 = vpop.permute.xlu0 %396
    %398 = vrot.lane.b32.xlu0 %v351, 64
    %v399 = vpop.permute.xlu0 %398
    %400 = vrot.lane.b32.xlu0 %v353, 64
    %v401 = vpop.permute.xlu0 %400
    %402 = vrot.lane.b32.xlu0 %v355, 64
    %v403 = vpop.permute.xlu0 %402
    %404 = vrot.lane.b32.xlu0 %v357, 64
    %v405 = vpop.permute.xlu0 %404
    %v422 = vmul.f32 %v246, %v375
    %v423 = vmul.f32 %v247, %v377
    %v424 = vmul.f32 %v248, %v379
    %v425 = vmul.f32 %v249, %v381
    %v426 = vmul.f32 %v250, %v383
    %v427 = vmul.f32 %v251, %v385
    %v428 = vmul.f32 %v252, %v387
    %v429 = vmul.f32 %v253, %v389
    %v430 = vmul.f32 %v254, %v391
    %v431 = vmul.f32 %v255, %v393
    %v432 = vmul.f32 %v256, %v395
    %v433 = vmul.f32 %v257, %v397
    %v434 = vmul.f32 %v258, %v399
    %v435 = vmul.f32 %v259, %v401
    %v436 = vmul.f32 %v260, %v403
    %v437 = vmul.f32 %v261, %v405
    %v438 = vld [vmem:[#allocation8] sm:$0xff]
    %v439 = vld [vmem:[#allocation2] sm:$0x1]
    %vm440 = vcmask 523264
    %v442 = vsel %vm440, %v438, 0
    %v445 = vsel %vm440, %v422, 0
    %v448 = vsel %vm440, %v423, 0
    %v451 = vsel %vm440, %v424, 0
    %v454 = vsel %vm440, %v425, 0
    %v457 = vsel %vm440, %v426, 0
    %v460 = vsel %vm440, %v427, 0
    %v463 = vsel %vm440, %v428, 0
    %v466 = vsel %vm440, %v429, 0
    %v469 = vsel %vm440, %v430, 0
    %v472 = vsel %vm440, %v431, 0
    %v475 = vsel %vm440, %v432, 0
    %v478 = vsel %vm440, %v433, 0
    %v481 = vsel %vm440, %v434, 0
    %v484 = vsel %vm440, %v435, 0
    %v487 = vsel %vm440, %v436, 0
    %v490 = vsel %vm440, %v437, 0
    %492 = vmatprep.subr.mxu0 0.0
    %493 = vmatpush1.xpose.msra.mxu0 %v490
    %494 = vmatprep.subr.mxu0 0.0
    %495 = vmatpush1.xpose.msra.mxu0 %v487
    %496 = vmatprep.subr.mxu0 0.0
    %497 = vmatpush1.xpose.msra.mxu0 %v484
    %498 = vmatprep.subr.mxu0 0.0
    %499 = vmatpush1.xpose.msra.mxu0 %v481
    %500 = vmatprep.subr.mxu0 0.0
    %501 = vmatpush1.xpose.msra.mxu0 %v478
    %502 = vmatprep.subr.mxu0 0.0
    %503 = vmatpush1.xpose.msra.mxu0 %v475
    %504 = vmatprep.subr.mxu0 0.0
    %505 = vmatpush1.xpose.msra.mxu0 %v472
    %506 = vmatprep.subr.mxu0 0.0
    %507 = vmatpush1.xpose.msra.mxu0 %v469
    %508 = vmatprep.subr.mxu0 0.0
    %509 = vmatpush1.xpose.msra.mxu0 %v466
    %510 = vmatprep.subr.mxu0 0.0
    %511 = vmatpush1.xpose.msra.mxu0 %v463
    %512 = vmatprep.subr.mxu0 0.0
    %513 = vmatpush1.xpose.msra.mxu0 %v460
    %514 = vmatprep.subr.mxu0 0.0
    %515 = vmatpush1.xpose.msra.mxu0 %v457
    %516 = vmatprep.subr.mxu0 0.0
    %517 = vmatpush1.xpose.msra.mxu0 %v454
    %518 = vmatprep.subr.mxu0 0.0
    %519 = vmatpush1.xpose.msra.mxu0 %v451
    %520 = vmatprep.subr.mxu0 0.0
    %521 = vmatpush1.xpose.msra.mxu0 %v448
    %522 = vmatprep.subr.mxu0 0.0
    %523 = vmatpush1.xpose.msra.mxu0 %v445
    %524 = vmatprep.subr.mxu0 0.0
    %525 = vmatpush2.xpose.msra.mxu0 0.0
    %526 = vmatprep.subr.mxu0 0.0
    %527 = vmatpush2.xpose.msra.mxu0 0.0
    %528 = vmatprep.subr.mxu0 0.0
    %529 = vmatpush2.xpose.msra.mxu0 0.0
    %530 = vmatprep.subr.mxu0 0.0
    %531 = vmatpush2.xpose.msra.mxu0 0.0
    %532 = vmatprep.subr.mxu0 0.0
    %533 = vmatpush2.xpose.msra.mxu0 0.0
    %534 = vmatprep.subr.mxu0 0.0
    %535 = vmatpush2.xpose.msra.mxu0 0.0
    %536 = vmatprep.subr.mxu0 0.0
    %537 = vmatpush2.xpose.msra.mxu0 0.0
    %538 = vmatprep.subr.mxu0 0.0
    %539 = vmatpush2.xpose.msra.mxu0 0.0
    %540 = vmatprep.subr.mxu0 0.0
    %541 = vmatpush2.xpose.msra.mxu0 0.0
    %542 = vmatprep.subr.mxu0 0.0
    %543 = vmatpush2.xpose.msra.mxu0 0.0
    %544 = vmatprep.subr.mxu0 0.0
    %545 = vmatpush2.xpose.msra.mxu0 0.0
    %546 = vmatprep.subr.mxu0 0.0
    %547 = vmatpush2.xpose.msra.mxu0 0.0
    %548 = vmatprep.subr.mxu0 0.0
    %549 = vmatpush2.xpose.msra.mxu0 0.0
    %550 = vmatprep.subr.mxu0 0.0
    %551 = vmatpush2.xpose.msra.mxu0 0.0
    %552 = vmatprep.subr.mxu0 0.0
    %553 = vmatpush2.xpose.msra.mxu0 0.0
    %554 = vmatprep.subr.mxu0 0.0
    %555 = vmatpush2.xpose.msra.mxu0 0.0
    %556 = vmatprep.mubr.f32.mxu0 0.0
    %557 = vmatmul.mubr.f32.gmra.mxu0 %v442
    %v558 = vpop.f32.mrf.mxu0
    %v559 = vadd.f32 0.0, %v558
    %v560 = vpop.f32.mrf.mxu0
    %561 = vdwg.mxu0
    %563 = vset.pattern.permute.xlu0 0
    %564 = vperm.xlu0 %563, %v439
    %v565 = vpop.permute.xlu0 %564
    %v567 = vlaneseq
    %v568 = vshrl.u32 %v567, 7
    %v569 = vsub.s32 0, %v568
    %v570 = vrot.slane %v565, %v569
    %v571 = vadd.f32 %v559, %v570
    %572 = vst [vmem:[#allocation9] sm:$0x1] %v571
    // Predicated region
    $region34: #{tpu_custom_call.1} parent=1 // pred_check
      _
    $region35: #{tpu_custom_call.1} parent=1 // pred_check_branch
      %574 = sbr.rel (0) target = $region37
    $region36: #{tpu_custom_call.1} parent=1 // pred_region
      %s576 = ssub.s32 16, 16
      %577 = vsyncadd [#allocation5], %s576
      %s579 = sshll.u32 [#allocation9], 4
      %s580 = int_to_ptr.vmem [resolvable:$true] %s579
      %582 = dma.vmem_to_hbm [thread:$0]  %s580, 16, %s5, [#allocation5]
    $region37: #{tpu_custom_call.1} parent=1 // pred_fallthru
      _
    // Predicated region
    $region38: #{tpu_custom_call.1} parent=1 // pred_check
      _
    $region39: #{tpu_custom_call.1} parent=1 // pred_check_branch
      %584 = sbr.rel (0) target = $region41
    $region40: #{tpu_custom_call.1} parent=1 // pred_region
      %585 = dma.done [#allocation5], 16
    $region41: #{tpu_custom_call.1} parent=1 // pred_fallthru
      _
    %586 = vsyncpa [#allocation4], 1
    %587 = vsyncpa [#allocation7], 1
    %588 = vsyncpa [#allocation5], 1

</llo_original>
